<compile_context>
chip_gen: v5e
topology: v5e:2x2
jax: 0.10.0
libtpu: 0.0.40
codegen_flags: <defaults>
</compile_context>

<pallas_src>
import math

import jax
import jax.numpy as jnp
from jax import lax
from jax.experimental import pallas as pl
from jax.experimental.pallas import tpu as pltpu


# ---------------------------------------------------------------------------
# Kernels
# ---------------------------------------------------------------------------

def _make_weighted_kernel(h):
    """Weighted case. Inputs: pred (R, W), weight (R, W) with R = tb*h.

    Output (resident f32 accumulator, shape (4, W), one slab per split):
      row 0: sum_r |p[r+1]-p[r]| * w[r] * ymask[r]   (vertical numerator)
      row 1: sum_r  w[r] * ymask[r]                  (vertical denominator)
      row 2: sum_r |p[r,c+1]-p[r,c]| * w[r,c], c<W-1 (horizontal numerator)
      row 3: sum_r  w[r,c]  (FULL width; wrapper drops the last column)
    """

    def kernel(p_ref, w_ref, out_ref, mask_ref):
        @pl.when(pl.program_id(1) == 0)
        def _init():
            out_ref[...] = jnp.zeros_like(out_ref)
            rows, cols = mask_ref.shape
            r = lax.broadcasted_iota(jnp.int32, (rows, cols), 0)
            mask_ref[...] = ((r % h) != (h - 1)).astype(jnp.float32)

        p = p_ref[...].astype(jnp.float32)
        w = w_ref[...].astype(jnp.float32)
        ymask = mask_ref[...]
        ncol = out_ref.shape[-1]

        # Vertical: adjacent rows; cross-plane pairs masked by the cached mask.
        yw = w[:-1, :] * ymask[:-1, :]
        yd = jnp.abs(p[1:, :] - p[:-1, :]) * yw
        # Horizontal: adjacent lanes (always within a plane).
        xd = jnp.abs(p[:, 1:] - p[:, :-1]) * w[:, :-1]

        # Only a sublane-axis partial reduction per step; the lane reduction is
        # done once in the wrapper.
        out_ref[0:1, :] = out_ref[0:1, :] + jnp.sum(yd, axis=0, keepdims=True)
        out_ref[1:2, :] = out_ref[1:2, :] + jnp.sum(yw, axis=0, keepdims=True)
        out_ref[2:3, 0:ncol - 1] = (
            out_ref[2:3, 0:ncol - 1] + jnp.sum(xd, axis=0, keepdims=True))
        # Full-width column sums of w; wrapper excludes the last column.
        out_ref[3:4, :] = out_ref[3:4, :] + jnp.sum(w, axis=0, keepdims=True)

    return kernel


def _make_plain_kernel(h):
    """Unweighted case (no weight stream; denominators analytic).

    Output rows: 0 = vertical |diff| column sums, 1 = horizontal |diff| column
    sums (columns 0..W-2).
    """

    def kernel(p_ref, out_ref, mask_ref):
        @pl.when(pl.program_id(1) == 0)
        def _init():
            out_ref[...] = jnp.zeros_like(out_ref)
            rows, cols = mask_ref.shape
            r = lax.broadcasted_iota(jnp.int32, (rows, cols), 0)
            mask_ref[...] = ((r % h) != (h - 1)).astype(jnp.float32)

        p = p_ref[...].astype(jnp.float32)
        ymask = mask_ref[...]
        ncol = out_ref.shape[-1]

        yd = jnp.abs(p[1:, :] - p[:-1, :]) * ymask[:-1, :]
        xd = jnp.abs(p[:, 1:] - p[:, :-1])

        out_ref[0:1, :] = out_ref[0:1, :] + jnp.sum(yd, axis=0, keepdims=True)
        out_ref[1:2, 0:ncol - 1] = (
            out_ref[1:2, 0:ncol - 1] + jnp.sum(xd, axis=0, keepdims=True))

    return kernel


# ---------------------------------------------------------------------------
# Tiling / budgets
# ---------------------------------------------------------------------------

def _budgets(weighted):
    """Per-stream block budget + scoped-VMEM limit, derived from the chip's
    actual VMEM capacity (128 MiB v5e/v6e, 64 MiB v7x, conservative default)."""
    vmem_cap = 64 << 20
    try:
        info = pltpu.get_tpu_info()
        cap = getattr(info, "vmem_capacity_bytes", None)
        if cap:
            vmem_cap = int(cap)
    except Exception:
        pass
    limit = min(int(vmem_cap * 3 // 4), 96 << 20)
    # Each input stream is double-buffered; the kernel also holds one
    # block-sized f32 mask scratch and a handful of block-sized f32
    # intermediates, so keep the per-stream block a small fraction of `limit`.
    divisor = 14 if weighted else 9
    block = max(256 * 1024, min(limit // divisor, 16 << 20))
    return block, limit


def _plan_tiling(num_planes, h, w, itemsize, budget_bytes):
    """Pick (tb, n_split, blocks_per_split, padded_planes).

    tb = whole (h, w) planes per block. Row count tb*h is aligned to the
    dtype's sublane tile (8 f32 / 16 bf16 / 32 int8) unless the block spans the
    whole (possibly padded) array.
    """
    align = max(8, 32 // max(1, itemsize))
    m = align // math.gcd(h, align)            # tb % m == 0  =>  (tb*h) % align == 0
    plane_bytes = max(1, h * w * itemsize)
    total_bytes = num_planes * plane_bytes
    budget_planes = max(1, budget_bytes // plane_bytes)

    tb_cap = min(num_planes, max(m, (budget_planes // m) * m))
    min_block_bytes = max(1, min(budget_bytes, 512 * 1024, total_bytes))

    # Regime A: aligned tb that divides num_planes exactly (no padding, no copy).
    for cand in range(tb_cap, 0, -1):
        if (cand % m == 0 and num_planes % cand == 0
                and cand * plane_bytes >= min_block_bytes):
            num_blocks = num_planes // cand
            n_split = 2 if (num_blocks >= 2 and num_blocks % 2 == 0) else 1
            return cand, n_split, num_blocks // n_split, num_planes

    # Regime B: whole array as one block (layout-legal regardless of alignment)
    # when it is small enough to sit in VMEM comfortably.
    if total_bytes <= max(budget_bytes, 8 << 20):
        return num_planes, 1, 1, num_planes

    # Regime C: zero-pad the plane count so an aligned tb tiles it exactly
    # (zero planes contribute 0 to every numerator/denominator).
    tb = max(m, (budget_planes // m) * m)
    num_blocks = -(-num_planes // tb)
    n_split = 2 if num_blocks >= 2 else 1
    blocks_per_split = -(-num_blocks // n_split)
    return tb, n_split, blocks_per_split, blocks_per_split * n_split * tb


# ---------------------------------------------------------------------------
# Wrapper
# ---------------------------------------------------------------------------

def _tv_partial_sums(pred2d, weight2d, h, max_block_bytes, vmem_limit_bytes):
    """pred2d/weight2d: (B*H, W). Returns per-term scalar sums (f32)."""
    total_rows, w = pred2d.shape
    num_planes = total_rows // h
    tb, n_split, blocks_per_split, padded_planes = _plan_tiling(
        num_planes, h, w, pred2d.dtype.itemsize, max_block_bytes)

    pad_rows = (padded_planes - num_planes) * h
    if pad_rows:
        pred2d = jnp.pad(pred2d, ((0, pad_rows), (0, 0)))
        if weight2d is not None:
            weight2d = jnp.pad(weight2d, ((0, pad_rows), (0, 0)))

    block_rows = tb * h
    grid = (n_split, blocks_per_split)
    n_terms = 2 if weight2d is None else 4

    in_spec = pl.BlockSpec((block_rows, w),
                           lambda s, i: (s * blocks_per_split + i, 0))
    # One accumulator slab per split (per TensorCore on v7x megacore).
    out_spec = pl.BlockSpec((None, n_terms, w), lambda s, i: (s, 0, 0))

    if weight2d is None:
        kernel = _make_plain_kernel(h)
        in_specs = [in_spec]
        args = (pred2d,)
    else:
        kernel = _make_weighted_kernel(h)
        in_specs = [in_spec, in_spec]
        args = (pred2d, weight2d)

    out = pl.pallas_call(
        kernel,
        out_shape=jax.ShapeDtypeStruct((n_split, n_terms, w), jnp.float32),
        grid_spec=pltpu.PrefetchScalarGridSpec(
            num_scalar_prefetch=0,
            grid=grid,
            in_specs=in_specs,
            out_specs=out_spec,
            scratch_shapes=[pltpu.VMEM((block_rows, w), jnp.float32)],
        ),
        compiler_params=pltpu.CompilerParams(
            dimension_semantics=("parallel", "arbitrary"),
            vmem_limit_bytes=vmem_limit_bytes,
        ),
    )(*args)

    # Tiny final reductions: sum the per-split slabs, then across lanes.
    totals = jnp.sum(out, axis=0)                       # (n_terms, W)
    y_sum = jnp.sum(totals[0])
    if weight2d is None:
        x_sum = jnp.sum(totals[1, : w - 1])
        return y_sum, x_sum
    yw_sum = jnp.sum(totals[1])
    x_sum = jnp.sum(totals[2, : w - 1])
    xw_sum = jnp.sum(totals[3, : w - 1])                # drop last (shifted) col
    return y_sum, yw_sum, x_sum, xw_sum


def weighted_tv_loss(pred, weight=None, loss_weight=1.0, reduction="mean",
                     *, max_block_bytes=None):
    """JAX/Pallas equivalent of basicsr WeightedTVLoss.forward.

    pred:   (N, C, H, W)
    weight: optional (N, C, H, W) elementwise weights (must be full-shape;
            basicsr's single-channel-broadcast 'mean' normalization, which
            divides by weight.sum() * C, is not supported here).
    """
    if reduction not in ("mean", "sum"):
        raise ValueError(
            f"Unsupported reduction: {reduction}. Supported: mean | sum")

    n, c, h, w = pred.shape
    if weight is not None and tuple(weight.shape) != tuple(pred.shape):
        raise ValueError("weight must have the same shape as pred "
                         "(single-channel broadcast weights are unsupported)")

    b = n * c
    pred2d = pred.reshape(b * h, w)
    weighted = weight is not None

    block_budget, vmem_limit = _budgets(weighted)
    if max_block_bytes is not None:
        block_budget = max_block_bytes

    if weighted:
        weight2d = weight.reshape(b * h, w)
        y_sum, yw_sum, x_sum, xw_sum = _tv_partial_sums(
            pred2d, weight2d, h, block_budget, vmem_limit)
    else:
        y_sum, x_sum = _tv_partial_sums(pred2d, None, h, block_budget,
                                        vmem_limit)
        yw_sum = xw_sum = None

    if reduction == "sum":
        y_loss = y_sum
        x_loss = x_sum
    else:  # mean
        if weighted:
            # basicsr weight_reduce_loss (full-channel weight): sum / weight.sum()
            y_loss = y_sum / yw_sum
            x_loss = x_sum / xw_sum
        else:
            y_loss = y_sum / jnp.float32(b * (h - 1) * w)
            x_loss = x_sum / jnp.float32(b * h * (w - 1))

    return loss_weight * x_loss + loss_weight * y_loss


# ---------------------------------------------------------------------------
# Reference + self-test
# ---------------------------------------------------------------------------

def _reference(pred, weight=None, loss_weight=1.0, reduction="mean"):
    yd = jnp.abs(pred[:, :, :-1, :] - pred[:, :, 1:, :]).astype(jnp.float32)
    xd = jnp.abs(pred[:, :, :, :-1] - pred[:, :, :, 1:]).astype(jnp.float32)
    if weight is None:
        if reduction == "mean":
            y, x = yd.mean(), xd.mean()
        else:
            y, x = yd.sum(), xd.sum()
    else:
        yw = weight[:, :, :-1, :].astype(jnp.float32)
        xw = weight[:, :, :, :-1].astype(jnp.float32)
        if reduction == "mean":
            y = (yd * yw).sum() / yw.sum()
            x = (xd * xw).sum() / xw.sum()
        else:
            y = (yd * yw).sum()
            x = (xd * xw).sum()
    return loss_weight * x + loss_weight * y


if __name__ == "__main__":
    key = jax.random.PRNGKey(0)
    k1, k2, k3, k4 = jax.random.split(key, 4)

    N, C, H, W = 2, 4, 16, 16
    pred = jax.random.normal(k1, (N, C, H, W), dtype=jnp.float32)
    weight = jax.random.uniform(k2, (N, C, H, W), dtype=jnp.float32) + 0.1

    # Unweighted, mean reduction (no weight stream is DMA'd in this path).
    out = jax.block_until_ready(weighted_tv_loss(pred))
    ref = _reference(pred, None, 1.0, "mean")
    assert jnp.allclose(out, ref, rtol=1e-5, atol=1e-5), (out, ref)

    # Weighted, mean reduction.
    out_w = jax.block_until_ready(
        weighted_tv_loss(pred, weight=weight, loss_weight=0.5))
    ref_w = _reference(pred, weight, 0.5, "mean")
    assert jnp.allclose(out_w, ref_w, rtol=1e-5, atol=1e-5), (out_w, ref_w)

    # Unweighted, sum reduction.
    out_s = jax.block_until_ready(weighted_tv_loss(pred, reduction="sum"))
    ref_s = _reference(pred, None, 1.0, "sum")
    assert jnp.allclose(out_s, ref_s, rtol=1e-5, atol=1e-4), (out_s, ref_s)

    # Weighted, sum reduction.
    out_ws = jax.block_until_ready(
        weighted_tv_loss(pred, weight=weight, loss_weight=1.0, reduction="sum"))
    ref_ws = _reference(pred, weight, 1.0, "sum")
    assert jnp.allclose(out_ws, ref_ws, rtol=1e-5, atol=1e-4), (out_ws, ref_ws)

    # Force multiple grid steps + the size-2 "parallel" split (small block
    # budget) to exercise the resident accumulators and pl.when-init paths.
    out_m = jax.block_until_ready(
        weighted_tv_loss(pred, weight=weight, loss_weight=1.0,
                         reduction="mean", max_block_bytes=2048))
    ref_m = _reference(pred, weight, 1.0, "mean")
    assert jnp.allclose(out_m, ref_m, rtol=1e-5, atol=1e-5), (out_m, ref_m)

    # Awkward shape (odd H, plane count not sublane-friendly): exercises the
    # whole-array-single-block regime.
    pred_a = jax.random.normal(k3, (1, 3, 10, 24), dtype=jnp.float32)
    weight_a = jax.random.uniform(k4, (1, 3, 10, 24), dtype=jnp.float32) + 0.1
    out_a = jax.block_until_ready(
        weighted_tv_loss(pred_a, weight=weight_a, loss_weight=1.0,
                         reduction="mean"))
    ref_a = _reference(pred_a, weight_a, 1.0, "mean")
    assert jnp.allclose(out_a, ref_a, rtol=1e-5, atol=1e-5), (out_a, ref_a)

    print("KERNEL_OK")
</pallas_src>

<mosaic_0001>
module attributes {stable_mosaic.version = 11 : i64} {
  func.func @kernel(%arg0: i32, %arg1: i32, %arg2: memref<128x16xf32, #tpu.memory_space<vmem>>, %arg3: memref<1x2x16xf32, #tpu.memory_space<vmem>>, %arg4: memref<128x16xf32, #tpu.memory_space<vmem>>) attributes {dimension_semantics = [#tpu.dimension_semantics<parallel>, #tpu.dimension_semantics<arbitrary>], iteration_bounds = array<i64: 1, 1>, scalar_prefetch = 0 : i64, scratch_operands = 1 : i64, tpu.core_type = #tpu.core_type<tc>, window_params = [{transform_indices = @transform_0, window_bounds = array<i64: 128, 16>}, {transform_indices = @transform_1, window_bounds = array<i64: 1, 2, 16>}]} {
    %c0_i32 = arith.constant 0 : i32
    %0 = arith.cmpi eq, %arg1, %c0_i32 : i32
    %1 = arith.extui %0 : i1 to i32
    %c0_i32_0 = arith.constant 0 : i32
    %2 = arith.cmpi ne, %1, %c0_i32_0 : i32
    scf.if %2 {
      %cst_16 = arith.constant 0.000000e+00 : f32
      %31 = vector.broadcast %cst_16 : f32 to vector<2x16xf32>
      %c0_17 = arith.constant 0 : index
      %c0_18 = arith.constant 0 : index
      %c0_19 = arith.constant 0 : index
      %32 = vector.load %arg3[%c0_17, %c0_18, %c0_19] : memref<1x2x16xf32, #tpu.memory_space<vmem>>, vector<1x2x16xf32>
      %33 = vector.shape_cast %32 : vector<1x2x16xf32> to vector<2x16xf32>
      %34 = vector.shape_cast %31 : vector<2x16xf32> to vector<1x2x16xf32>
      tpu.vector_store %arg3[%c0_17, %c0_18, %c0_19], %34 {strides = array<i32>} : memref<1x2x16xf32, #tpu.memory_space<vmem>>, vector<1x2x16xf32>,
      %35 = tpu.iota {dimensions = array<i32: 0>} : vector<128x16xi32>
      %c16_i32 = arith.constant 16 : i32
      %c0_i32_20 = arith.constant 0 : i32
      %36 = arith.cmpi eq, %c16_i32, %c0_i32_20 : i32
      %c1_i32 = arith.constant 1 : i32
      %37 = arith.select %36, %c1_i32, %c16_i32 : i32
      %38 = vector.broadcast %37 : i32 to vector<128x16xi32>
      %39 = arith.remsi %35, %38 : vector<128x16xi32>
      %c0_i32_21 = arith.constant 0 : i32
      %40 = vector.broadcast %c0_i32_21 : i32 to vector<128x16xi32>
      %41 = arith.cmpi ne, %39, %40 : vector<128x16xi32>
      %c0_i32_22 = arith.constant 0 : i32
      %42 = vector.broadcast %c0_i32_22 : i32 to vector<128x16xi32>
      %43 = arith.cmpi slt, %39, %42 : vector<128x16xi32>
      %c0_i32_23 = arith.constant 0 : i32
      %44 = arith.cmpi slt, %37, %c0_i32_23 : i32
      %45 = vector.broadcast %44 : i1 to vector<128x16xi1>
      %46 = vector.broadcast %45 : vector<128x16xi1> to vector<128x16xi1>
      %47 = arith.xori %43, %46 : vector<128x16xi1>
      %48 = arith.andi %47, %41 : vector<128x16xi1>
      %49 = vector.broadcast %37 : i32 to vector<128x16xi32>
      %50 = arith.addi %39, %49 : vector<128x16xi32>
      %51 = arith.select %48, %50, %39 : vector<128x16xi1>, vector<128x16xi32>
      %c15_i32 = arith.constant 15 : i32
      %52 = vector.broadcast %c15_i32 : i32 to vector<128x16xi32>
      %53 = arith.cmpi ne, %51, %52 : vector<128x16xi32>
      %54 = arith.extui %53 : vector<128x16xi1> to vector<128x16xi32>
      %55 = arith.sitofp %54 : vector<128x16xi32> to vector<128x16xf32>
      %c0_24 = arith.constant 0 : index
      %c0_25 = arith.constant 0 : index
      %56 = vector.load %arg4[%c0_24, %c0_25] : memref<128x16xf32, #tpu.memory_space<vmem>>, vector<128x16xf32>
      tpu.vector_store %arg4[%c0_24, %c0_25], %55 {strides = array<i32>} : memref<128x16xf32, #tpu.memory_space<vmem>>, vector<128x16xf32>,
    } else {
    }
    %c0 = arith.constant 0 : index
    %c0_1 = arith.constant 0 : index
    %3 = vector.load %arg2[%c0, %c0_1] : memref<128x16xf32, #tpu.memory_space<vmem>>, vector<128x16xf32>
    %c0_2 = arith.constant 0 : index
    %c0_3 = arith.constant 0 : index
    %4 = vector.load %arg4[%c0_2, %c0_3] : memref<128x16xf32, #tpu.memory_space<vmem>>, vector<128x16xf32>
    %5 = vector.extract_strided_slice %3 {offsets = [1, 0], sizes = [127, 16], strides = [1, 1]} : vector<128x16xf32> to vector<127x16xf32>
    %6 = vector.extract_strided_slice %3 {offsets = [0, 0], sizes = [127, 16], strides = [1, 1]} : vector<128x16xf32> to vector<127x16xf32>
    %7 = arith.subf %5, %6 : vector<127x16xf32>
    %8 = math.absf %7 : vector<127x16xf32>
    %9 = vector.extract_strided_slice %4 {offsets = [0, 0], sizes = [127, 16], strides = [1, 1]} : vector<128x16xf32> to vector<127x16xf32>
    %10 = arith.mulf %8, %9 : vector<127x16xf32>
    %11 = vector.extract_strided_slice %3 {offsets = [0, 1], sizes = [128, 15], strides = [1, 1]} : vector<128x16xf32> to vector<128x15xf32>
    %12 = vector.extract_strided_slice %3 {offsets = [0, 0], sizes = [128, 15], strides = [1, 1]} : vector<128x16xf32> to vector<128x15xf32>
    %13 = arith.subf %11, %12 : vector<128x15xf32>
    %14 = math.absf %13 : vector<128x15xf32>
    %c0_4 = arith.constant 0 : index
    %c0_5 = arith.constant 0 : index
    %c0_6 = arith.constant 0 : index
    %15 = vector.load %arg3[%c0_4, %c0_5, %c0_6] : memref<1x2x16xf32, #tpu.memory_space<vmem>>, vector<1x1x16xf32>
    %16 = vector.shape_cast %15 : vector<1x1x16xf32> to vector<1x16xf32>
    %cst = arith.constant dense<0.000000e+00> : vector<16xf32>
    %17 = vector.multi_reduction <add>, %10, %cst [0] : vector<127x16xf32> to vector<16xf32>
    %18 = vector.shape_cast %17 : vector<16xf32> to vector<1x16xf32>
    %19 = arith.addf %16, %18 : vector<1x16xf32>
    %c0_7 = arith.constant 0 : index
    %c0_8 = arith.constant 0 : index
    %c0_9 = arith.constant 0 : index
    %20 = vector.load %arg3[%c0_7, %c0_8, %c0_9] : memref<1x2x16xf32, #tpu.memory_space<vmem>>, vector<1x1x16xf32>
    %21 = vector.shape_cast %20 : vector<1x1x16xf32> to vector<1x16xf32>
    %22 = vector.shape_cast %19 : vector<1x16xf32> to vector<1x1x16xf32>
    tpu.vector_store %arg3[%c0_7, %c0_8, %c0_9], %22 {strides = array<i32>} : memref<1x2x16xf32, #tpu.memory_space<vmem>>, vector<1x1x16xf32>,
    %c0_10 = arith.constant 0 : index
    %c1 = arith.constant 1 : index
    %c0_11 = arith.constant 0 : index
    %23 = vector.load %arg3[%c0_10, %c1, %c0_11] : memref<1x2x16xf32, #tpu.memory_space<vmem>>, vector<1x1x15xf32>
    %24 = vector.shape_cast %23 : vector<1x1x15xf32> to vector<1x15xf32>
    %cst_12 = arith.constant dense<0.000000e+00> : vector<15xf32>
    %25 = vector.multi_reduction <add>, %14, %cst_12 [0] : vector<128x15xf32> to vector<15xf32>
    %26 = vector.shape_cast %25 : vector<15xf32> to vector<1x15xf32>
    %27 = arith.addf %24, %26 : vector<1x15xf32>
    %c0_13 = arith.constant 0 : index
    %c1_14 = arith.constant 1 : index
    %c0_15 = arith.constant 0 : index
    %28 = vector.load %arg3[%c0_13, %c1_14, %c0_15] : memref<1x2x16xf32, #tpu.memory_space<vmem>>, vector<1x1x15xf32>
    %29 = vector.shape_cast %28 : vector<1x1x15xf32> to vector<1x15xf32>
    %30 = vector.shape_cast %27 : vector<1x15xf32> to vector<1x1x15xf32>
    tpu.vector_store %arg3[%c0_13, %c1_14, %c0_15], %30 {strides = array<i32>} : memref<1x2x16xf32, #tpu.memory_space<vmem>>, vector<1x1x15xf32>,
    return
  }
  func.func @transform_0(%arg0: i32, %arg1: i32) -> (i32, i32) {
    %c1_i32 = arith.constant 1 : i32
    %0 = arith.muli %arg0, %c1_i32 : i32
    %1 = arith.addi %0, %arg1 : i32
    %c0_i32 = arith.constant 0 : i32
    %c0_i32_0 = arith.constant 0 : i32
    return %1, %c0_i32 : i32, i32
  }
  func.func @transform_1(%arg0: i32, %arg1: i32) -> (i32, i32, i32) {
    %c0_i32 = arith.constant 0 : i32
    %c0_i32_0 = arith.constant 0 : i32
    %c0_i32_1 = arith.constant 0 : i32
    return %arg0, %c0_i32, %c0_i32_0 : i32, i32, i32
  }
}

</mosaic_0001>

<llo_original>
// kernel: tpu_custom_call.1
$region0: #{tpu_custom_call.1}
  #allocation0 [shape = 'u32[]', space=smem, size = 0x4, offset = 0x4, fixed_abs, tag = 'smem constant byte address 0x4 - core index']
  #allocation1 [shape = 'u32[72,128]{1,0:T(1,128)}', space=vmem, size = 0x9000, scoped, tag = 'internal scratch']
  #allocation2 [shape = 'f32[128,16]{1,0:T(8,128)}', space=vmem, size = 0x10000, scoped, tag = 'scratch operand']
  %s0 = inlined_call_operand.vmem [shape: f32[128,16], index: 0, kind: input, shape index: {}]
  %s1 = inlined_call_operand.hbm [shape: f32[1,2,16], index: 1, kind: output, shape index: {}]
  %s2 = sld [smem:[#allocation0]]
  $region18: #{tpu_custom_call.1} parent=0
    _
  %s4 = ssub.s32 1, %s2
  %s5 = scalar_select 0, %s4, %s2
  $region1: #{tpu_custom_call.1} parent=0
    #allocation3 [shape = 'u8[1024]{0}', space=vmem, size = 0x400, scoped, tag = 'output window, operand 0, single buffered']
    #allocation4 [shape = 's32[1]{0}', space=sflag, size = 0x4, scoped, tag = 'scoped memory for tpu_custom_call.1']
    %6 = vsyncpa [#allocation4], 0
    // Predicated region
    $region2: #{tpu_custom_call.1} parent=1 // pred_check
      _
    $region3: #{tpu_custom_call.1} parent=1 // pred_check_branch
      %8 = sbr.rel (0) target = $region5
    $region4: #{tpu_custom_call.1} parent=1 // pred_region
      %s9 = sadd.s32 0, 0
      %s10 = smul.u32 16, %s9
      %p11 = scmp.lt.s32.totalorder %s10, 15
      %s12 = scalar_select %p11, %s10, 15
      %s13 = smul.addr %s12, 8
      %s14 = scalar_lea.vmem %s0, %s13
      %s15 = sadd.s32 0, 0
      %s16 = smul.u32 16, %s15
    $region5: #{tpu_custom_call.1} parent=1 // pred_fallthru
      _
    %s17 = sadd.s32 0, 0
    %s18 = smul.u32 16, %s17
    %p19 = scmp.lt.s32.totalorder %s18, 15
    %s20 = scalar_select %p19, %s18, 15
    %s21 = smul.addr %s20, 8
    %s22 = scalar_lea.vmem %s0, %s21
    %s23 = sadd.s32 0, 0
    %s24 = smul.u32 16, %s23
    %p25 = scmp.lt.s32.totalorder %s24, 15
    %s26 = scalar_select %p25, %s24, 15
    %s27 = smul.addr %s26, 8
    %s28 = scalar_lea.vmem %s0, %s27
    %s29 = sadd.s32 0, 0
    %s30 = smul.u32 16, %s29
    %p31 = scmp.eq.s32.totalorder 0, 0
    // Predicated region
    $region6: #{tpu_custom_call.1} parent=1 // pred_check
      %p32 = pneg %p31
    $region7: #{tpu_custom_call.1} parent=1 // pred_check_branch
      %34 = sbr.rel (%p32) target = $region9
    $region8: #{tpu_custom_call.1} parent=1 // pred_region
      %vm35 = vcmask 123904
      %36 = vst.msk [vmem:[#allocation3] sm:$0x3] %vm35, 0.0
      %v37 = vlaneseq
      %v38 = vshrl.u32 %v37, 7
      %v39 = vadd.s32 %v38, 8
      %v40 = vadd.s32 %v38, 16
      %v41 = vadd.s32 %v38, 24
      %v42 = vadd.s32 %v38, 32
      %v43 = vadd.s32 %v38, 40
      %v44 = vadd.s32 %v38, 48
      %v45 = vadd.s32 %v38, 56
      %v46 = vadd.s32 %v38, 64
      %v47 = vadd.s32 %v38, 72
      %v48 = vadd.s32 %v38, 80
      %v49 = vadd.s32 %v38, 88
      %v50 = vadd.s32 %v38, 96
      %v51 = vadd.s32 %v38, 104
      %v52 = vadd.s32 %v38, 112
      %v53 = vadd.s32 %v38, 120
      %vm54 = vcmp.lt.s32.totalorder %v38, 0
      %v55 = vsub.s32 0, %v38
      %v56 = vsel %vm54, %v55, %v38
      %v57 = vshrl.u32 %v56, 4
      %v58 = vand.u32 %v56, 15
      %v59 = vsub.s32 0, %v58
      %v60 = vsel %vm54, %v59, %v58
      %vm61 = vcmp.lt.s32.totalorder %v39, 0
      %v62 = vsub.s32 0, %v39
      %v63 = vsel %vm61, %v62, %v39
      %v64 = vshrl.u32 %v63, 4
      %v65 = vand.u32 %v63, 15
      %v66 = vsub.s32 0, %v65
      %v67 = vsel %vm61, %v66, %v65
      %vm68 = vcmp.lt.s32.totalorder %v40, 0
      %v69 = vsub.s32 0, %v40
      %v70 = vsel %vm68, %v69, %v40
      %v71 = vshrl.u32 %v70, 4
      %v72 = vand.u32 %v70, 15
      %v73 = vsub.s32 0, %v72
      %v74 = vsel %vm68, %v73, %v72
      %vm75 = vcmp.lt.s32.totalorder %v41, 0
      %v76 = vsub.s32 0, %v41
      %v77 = vsel %vm75, %v76, %v41
      %v78 = vshrl.u32 %v77, 4
      %v79 = vand.u32 %v77, 15
      %v80 = vsub.s32 0, %v79
      %v81 = vsel %vm75, %v80, %v79
      %vm82 = vcmp.lt.s32.totalorder %v42, 0
      %v83 = vsub.s32 0, %v42
      %v84 = vsel %vm82, %v83, %v42
      %v85 = vshrl.u32 %v84, 4
      %v86 = vand.u32 %v84, 15
      %v87 = vsub.s32 0, %v86
      %v88 = vsel %vm82, %v87, %v86
      %vm89 = vcmp.lt.s32.totalorder %v43, 0
      %v90 = vsub.s32 0, %v43
      %v91 = vsel %vm89, %v90, %v43
      %v92 = vshrl.u32 %v91, 4
      %v93 = vand.u32 %v91, 15
      %v94 = vsub.s32 0, %v93
      %v95 = vsel %vm89, %v94, %v93
      %vm96 = vcmp.lt.s32.totalorder %v44, 0
      %v97 = vsub.s32 0, %v44
      %v98 = vsel %vm96, %v97, %v44
      %v99 = vshrl.u32 %v98, 4
      %v100 = vand.u32 %v98, 15
      %v101 = vsub.s32 0, %v100
      %v102 = vsel %vm96, %v101, %v100
      %vm103 = vcmp.lt.s32.totalorder %v45, 0
      %v104 = vsub.s32 0, %v45
      %v105 = vsel %vm103, %v104, %v45
      %v106 = vshrl.u32 %v105, 4
      %v107 = vand.u32 %v105, 15
      %v108 = vsub.s32 0, %v107
      %v109 = vsel %vm103, %v108, %v107
      %vm110 = vcmp.lt.s32.totalorder %v46, 0
      %v111 = vsub.s32 0, %v46
      %v112 = vsel %vm110, %v111, %v46
      %v113 = vshrl.u32 %v112, 4
      %v114 = vand.u32 %v112, 15
      %v115 = vsub.s32 0, %v114
      %v116 = vsel %vm110, %v115, %v114
      %vm117 = vcmp.lt.s32.totalorder %v47, 0
      %v118 = vsub.s32 0, %v47
      %v119 = vsel %vm117, %v118, %v47
      %v120 = vshrl.u32 %v119, 4
      %v121 = vand.u32 %v119, 15
      %v122 = vsub.s32 0, %v121
      %v123 = vsel %vm117, %v122, %v121
      %vm124 = vcmp.lt.s32.totalorder %v48, 0
      %v125 = vsub.s32 0, %v48
      %v126 = vsel %vm124, %v125, %v48
      %v127 = vshrl.u32 %v126, 4
      %v128 = vand.u32 %v126, 15
      %v129 = vsub.s32 0, %v128
      %v130 = vsel %vm124, %v129, %v128
      %vm131 = vcmp.lt.s32.totalorder %v49, 0
      %v132 = vsub.s32 0, %v49
      %v133 = vsel %vm131, %v132, %v49
      %v134 = vshrl.u32 %v133, 4
      %v135 = vand.u32 %v133, 15
      %v136 = vsub.s32 0, %v135
      %v137 = vsel %vm131, %v136, %v135
      %vm138 = vcmp.lt.s32.totalorder %v50, 0
      %v139 = vsub.s32 0, %v50
      %v140 = vsel %vm138, %v139, %v50
      %v141 = vshrl.u32 %v140, 4
      %v142 = vand.u32 %v140, 15
      %v143 = vsub.s32 0, %v142
      %v144 = vsel %vm138, %v143, %v142
      %vm145 = vcmp.lt.s32.totalorder %v51, 0
      %v146 = vsub.s32 0, %v51
      %v147 = vsel %vm145, %v146, %v51
      %v148 = vshrl.u32 %v147, 4
      %v149 = vand.u32 %v147, 15
      %v150 = vsub.s32 0, %v149
      %v151 = vsel %vm145, %v150, %v149
      %vm152 = vcmp.lt.s32.totalorder %v52, 0
      %v153 = vsub.s32 0, %v52
      %v154 = vsel %vm152, %v153, %v52
      %v155 = vshrl.u32 %v154, 4
      %v156 = vand.u32 %v154, 15
      %v157 = vsub.s32 0, %v156
      %v158 = vsel %vm152, %v157, %v156
      %vm159 = vcmp.lt.s32.totalorder %v53, 0
      %v160 = vsub.s32 0, %v53
      %v161 = vsel %vm159, %v160, %v53
      %v162 = vshrl.u32 %v161, 4
      %v163 = vand.u32 %v161, 15
      %v164 = vsub.s32 0, %v163
      %v165 = vsel %vm159, %v164, %v163
      %vm166 = vcmp.ne.s32.totalorder %v60, 0
      %vm167 = vcmp.ne.s32.totalorder %v67, 0
      %vm168 = vcmp.ne.s32.totalorder %v74, 0
      %vm169 = vcmp.ne.s32.totalorder %v81, 0
      %vm170 = vcmp.ne.s32.totalorder %v88, 0
      %vm171 = vcmp.ne.s32.totalorder %v95, 0
      %vm172 = vcmp.ne.s32.totalorder %v102, 0
      %vm173 = vcmp.ne.s32.totalorder %v109, 0
      %vm174 = vcmp.ne.s32.totalorder %v116, 0
      %vm175 = vcmp.ne.s32.totalorder %v123, 0
      %vm176 = vcmp.ne.s32.totalorder %v130, 0
      %vm177 = vcmp.ne.s32.totalorder %v137, 0
      %vm178 = vcmp.ne.s32.totalorder %v144, 0
      %vm179 = vcmp.ne.s32.totalorder %v151, 0
      %vm180 = vcmp.ne.s32.totalorder %v158, 0
      %vm181 = vcmp.ne.s32.totalorder %v165, 0
      %vm182 = vcmp.lt.s32.totalorder %v60, 0
      %vm183 = vcmp.lt.s32.totalorder %v67, 0
      %vm184 = vcmp.lt.s32.totalorder %v74, 0
      %vm185 = vcmp.lt.s32.totalorder %v81, 0
      %vm186 = vcmp.lt.s32.totalorder %v88, 0
      %vm187 = vcmp.lt.s32.totalorder %v95, 0
      %vm188 = vcmp.lt.s32.totalorder %v102, 0
      %vm189 = vcmp.lt.s32.totalorder %v109, 0
      %vm190 = vcmp.lt.s32.totalorder %v116, 0
      %vm191 = vcmp.lt.s32.totalorder %v123, 0
      %vm192 = vcmp.lt.s32.totalorder %v130, 0
      %vm193 = vcmp.lt.s32.totalorder %v137, 0
      %vm194 = vcmp.lt.s32.totalorder %v144, 0
      %vm195 = vcmp.lt.s32.totalorder %v151, 0
      %vm196 = vcmp.lt.s32.totalorder %v158, 0
      %vm197 = vcmp.lt.s32.totalorder %v165, 0
      %vm198 = vmand %vm182, %vm166
      %vm199 = vmand %vm183, %vm167
      %vm200 = vmand %vm184, %vm168
      %vm201 = vmand %vm185, %vm169
      %vm202 = vmand %vm186, %vm170
      %vm203 = vmand %vm187, %vm171
      %vm204 = vmand %vm188, %vm172
      %vm205 = vmand %vm189, %vm173
      %vm206 = vmand %vm190, %vm174
      %vm207 = vmand %vm191, %vm175
      %vm208 = vmand %vm192, %vm176
      %vm209 = vmand %vm193, %vm177
      %vm210 = vmand %vm194, %vm178
      %vm211 = vmand %vm195, %vm179
      %vm212 = vmand %vm196, %vm180
      %vm213 = vmand %vm197, %vm181
      %v214 = vadd.s32 %v60, 16
      %v215 = vadd.s32 %v67, 16
      %v216 = vadd.s32 %v74, 16
      %v217 = vadd.s32 %v81, 16
      %v218 = vadd.s32 %v88, 16
      %v219 = vadd.s32 %v95, 16
      %v220 = vadd.s32 %v102, 16
      %v221 = vadd.s32 %v109, 16
      %v222 = vadd.s32 %v116, 16
      %v223 = vadd.s32 %v123, 16
      %v224 = vadd.s32 %v130, 16
      %v225 = vadd.s32 %v137, 16
      %v226 = vadd.s32 %v144, 16
      %v227 = vadd.s32 %v151, 16
      %v228 = vadd.s32 %v158, 16
      %v229 = vadd.s32 %v165, 16
      %v230 = vsel %vm198, %v214, %v60
      %v231 = vsel %vm199, %v215, %v67
      %v232 = vsel %vm200, %v216, %v74
      %v233 = vsel %vm201, %v217, %v81
      %v234 = vsel %vm202, %v218, %v88
      %v235 = vsel %vm203, %v219, %v95
      %v236 = vsel %vm204, %v220, %v102
      %v237 = vsel %vm205, %v221, %v109
      %v238 = vsel %vm206, %v222, %v116
      %v239 = vsel %vm207, %v223, %v123
      %v240 = vsel %vm208, %v224, %v130
      %v241 = vsel %vm209, %v225, %v137
      %v242 = vsel %vm210, %v226, %v144
      %v243 = vsel %vm211, %v227, %v151
      %v244 = vsel %vm212, %v228, %v158
      %v245 = vsel %vm213, %v229, %v165
      %vm246 = vcmp.ne.s32.totalorder %v230, 15
      %vm247 = vcmp.ne.s32.totalorder %v231, 15
      %vm248 = vcmp.ne.s32.totalorder %v232, 15
      %vm249 = vcmp.ne.s32.totalorder %v233, 15
      %vm250 = vcmp.ne.s32.totalorder %v234, 15
      %vm251 = vcmp.ne.s32.totalorder %v235, 15
      %vm252 = vcmp.ne.s32.totalorder %v236, 15
      %vm253 = vcmp.ne.s32.totalorder %v237, 15
      %vm254 = vcmp.ne.s32.totalorder %v238, 15
      %vm255 = vcmp.ne.s32.totalorder %v239, 15
      %vm256 = vcmp.ne.s32.totalorder %v240, 15
      %vm257 = vcmp.ne.s32.totalorder %v241, 15
      %vm258 = vcmp.ne.s32.totalorder %v242, 15
      %vm259 = vcmp.ne.s32.totalorder %v243, 15
      %vm260 = vcmp.ne.s32.totalorder %v244, 15
      %vm261 = vcmp.ne.s32.totalorder %v245, 15
      %v262 = vsel %vm246, 1, 0
      %v263 = vsel %vm247, 1, 0
      %v264 = vsel %vm248, 1, 0
      %v265 = vsel %vm249, 1, 0
      %v266 = vsel %vm250, 1, 0
      %v267 = vsel %vm251, 1, 0
      %v268 = vsel %vm252, 1, 0
      %v269 = vsel %vm253, 1, 0
      %v270 = vsel %vm254, 1, 0
      %v271 = vsel %vm255, 1, 0
      %v272 = vsel %vm256, 1, 0
      %v273 = vsel %vm257, 1, 0
      %v274 = vsel %vm258, 1, 0
      %v275 = vsel %vm259, 1, 0
      %v276 = vsel %vm260, 1, 0
      %v277 = vsel %vm261, 1, 0
      %v278 = vcvt.s32.f32 %v262
      %v279 = vcvt.s32.f32 %v263
      %v280 = vcvt.s32.f32 %v264
      %v281 = vcvt.s32.f32 %v265
      %v282 = vcvt.s32.f32 %v266
      %v283 = vcvt.s32.f32 %v267
      %v284 = vcvt.s32.f32 %v268
      %v285 = vcvt.s32.f32 %v269
      %v286 = vcvt.s32.f32 %v270
      %v287 = vcvt.s32.f32 %v271
      %v288 = vcvt.s32.f32 %v272
      %v289 = vcvt.s32.f32 %v273
      %v290 = vcvt.s32.f32 %v274
      %v291 = vcvt.s32.f32 %v275
      %v292 = vcvt.s32.f32 %v276
      %v293 = vcvt.s32.f32 %v277
      %vm294 = vcmask 130048
      %295 = vst.msk [vmem:[#allocation2] sm:$0xff] %vm294, %v278
      %296 = vst.msk [vmem:[#allocation2 + $0x8] sm:$0xff] %vm294, %v279
      %297 = vst.msk [vmem:[#allocation2 + $0x10] sm:$0xff] %vm294, %v280
      %298 = vst.msk [vmem:[#allocation2 + $0x18] sm:$0xff] %vm294, %v281
      %299 = vst.msk [vmem:[#allocation2 + $0x20] sm:$0xff] %vm294, %v282
      %300 = vst.msk [vmem:[#allocation2 + $0x28] sm:$0xff] %vm294, %v283
      %301 = vst.msk [vmem:[#allocation2 + $0x30] sm:$0xff] %vm294, %v284
      %302 = vst.msk [vmem:[#allocation2 + $0x38] sm:$0xff] %vm294, %v285
      %303 = vst.msk [vmem:[#allocation2 + $0x40] sm:$0xff] %vm294, %v286
      %304 = vst.msk [vmem:[#allocation2 + $0x48] sm:$0xff] %vm294, %v287
      %305 = vst.msk [vmem:[#allocation2 + $0x50] sm:$0xff] %vm294, %v288
      %306 = vst.msk [vmem:[#allocation2 + $0x58] sm:$0xff] %vm294, %v289
      %307 = vst.msk [vmem:[#allocation2 + $0x60] sm:$0xff] %vm294, %v290
      %308 = vst.msk [vmem:[#allocation2 + $0x68] sm:$0xff] %vm294, %v291
      %309 = vst.msk [vmem:[#allocation2 + $0x70] sm:$0xff] %vm294, %v292
      %310 = vst.msk [vmem:[#allocation2 + $0x78] sm:$0xff] %vm294, %v293
    $region9: #{tpu_custom_call.1} parent=1 // pred_fallthru
      _
    %v311 = vld [vmem:[%s28] sm:$0xff]
    %v312 = vld [vmem:[%s28 + $0x8] sm:$0xff]
    %v313 = vld [vmem:[%s28 + $0x10] sm:$0xff]
    %v314 = vld [vmem:[%s28 + $0x18] sm:$0xff]
    %v315 = vld [vmem:[%s28 + $0x20] sm:$0xff]
    %v316 = vld [vmem:[%s28 + $0x28] sm:$0xff]
    %v317 = vld [vmem:[%s28 + $0x30] sm:$0xff]
    %v318 = vld [vmem:[%s28 + $0x38] sm:$0xff]
    %v319 = vld [vmem:[%s28 + $0x40] sm:$0xff]
    %v320 = vld [vmem:[%s28 + $0x48] sm:$0xff]
    %v321 = vld [vmem:[%s28 + $0x50] sm:$0xff]
    %v322 = vld [vmem:[%s28 + $0x58] sm:$0xff]
    %v323 = vld [vmem:[%s28 + $0x60] sm:$0xff]
    %v324 = vld [vmem:[%s28 + $0x68] sm:$0xff]
    %v325 = vld [vmem:[%s28 + $0x70] sm:$0xff]
    %v326 = vld [vmem:[%s28 + $0x78] sm:$0xff]
    %v327 = vld [vmem:[#allocation2] sm:$0xff]
    %v328 = vld [vmem:[#allocation2 + $0x8] sm:$0xff]
    %v329 = vld [vmem:[#allocation2 + $0x10] sm:$0xff]
    %v330 = vld [vmem:[#allocation2 + $0x18] sm:$0xff]
    %v331 = vld [vmem:[#allocation2 + $0x20] sm:$0xff]
    %v332 = vld [vmem:[#allocation2 + $0x28] sm:$0xff]
    %v333 = vld [vmem:[#allocation2 + $0x30] sm:$0xff]
    %v334 = vld [vmem:[#allocation2 + $0x38] sm:$0xff]
    %v335 = vld [vmem:[#allocation2 + $0x40] sm:$0xff]
    %v336 = vld [vmem:[#allocation2 + $0x48] sm:$0xff]
    %v337 = vld [vmem:[#allocation2 + $0x50] sm:$0xff]
    %v338 = vld [vmem:[#allocation2 + $0x58] sm:$0xff]
    %v339 = vld [vmem:[#allocation2 + $0x60] sm:$0xff]
    %v340 = vld [vmem:[#allocation2 + $0x68] sm:$0xff]
    %v341 = vld [vmem:[#allocation2 + $0x70] sm:$0xff]
    %v342 = vld [vmem:[#allocation2 + $0x78] sm:$0xff]
    %vm359 = vcmask 1040384
    %v360 = vrot.slane %v311, 7
    %v361 = vrot.slane %v312, 7
    %v362 = vsel %vm359, %v360, %v361
    %v363 = vrot.slane %v313, 7
    %v364 = vsel %vm359, %v361, %v363
    %v365 = vrot.slane %v314, 7
    %v366 = vsel %vm359, %v363, %v365
    %v367 = vrot.slane %v315, 7
    %v368 = vsel %vm359, %v365, %v367
    %v369 = vrot.slane %v316, 7
    %v370 = vsel %vm359, %v367, %v369
    %v371 = vrot.slane %v317, 7
    %v372 = vsel %vm359, %v369, %v371
    %v373 = vrot.slane %v318, 7
    %v374 = vsel %vm359, %v371, %v373
    %v375 = vrot.slane %v319, 7
    %v376 = vsel %vm359, %v373, %v375
    %v377 = vrot.slane %v320, 7
    %v378 = vsel %vm359, %v375, %v377
    %v379 = vrot.slane %v321, 7
    %v380 = vsel %vm359, %v377, %v379
    %v381 = vrot.slane %v322, 7
    %v382 = vsel %vm359, %v379, %v381
    %v383 = vrot.slane %v323, 7
    %v384 = vsel %vm359, %v381, %v383
    %v385 = vrot.slane %v324, 7
    %v386 = vsel %vm359, %v383, %v385
    %v387 = vrot.slane %v325, 7
    %v388 = vsel %vm359, %v385, %v387
    %v389 = vrot.slane %v326, 7
    %v390 = vsel %vm359, %v387, %v389
    %v407 = vsub.f32 %v311, %v360
    %v408 = vsub.f32 %v312, %v362
    %v409 = vsub.f32 %v313, %v364
    %v410 = vsub.f32 %v314, %v366
    %v411 = vsub.f32 %v315, %v368
    %v412 = vsub.f32 %v316, %v370
    %v413 = vsub.f32 %v317, %v372
    %v414 = vsub.f32 %v318, %v374
    %v415 = vsub.f32 %v319, %v376
    %v416 = vsub.f32 %v320, %v378
    %v417 = vsub.f32 %v321, %v380
    %v418 = vsub.f32 %v322, %v382
    %v419 = vsub.f32 %v323, %v384
    %v420 = vsub.f32 %v324, %v386
    %v421 = vsub.f32 %v325, %v388
    %v422 = vsub.f32 %v326, %v390
    %v423 = vand.u32 2147483647, %v407
    %v424 = vand.u32 2147483647, %v408
    %v425 = vand.u32 2147483647, %v409
    %v426 = vand.u32 2147483647, %v410
    %v427 = vand.u32 2147483647, %v411
    %v428 = vand.u32 2147483647, %v412
    %v429 = vand.u32 2147483647, %v413
    %v430 = vand.u32 2147483647, %v414
    %v431 = vand.u32 2147483647, %v415
    %v432 = vand.u32 2147483647, %v416
    %v433 = vand.u32 2147483647, %v417
    %v434 = vand.u32 2147483647, %v418
    %v435 = vand.u32 2147483647, %v419
    %v436 = vand.u32 2147483647, %v420
    %v437 = vand.u32 2147483647, %v421
    %v438 = vand.u32 2147483647, %v422
    %v455 = vrot.slane %v327, 7
    %v456 = vrot.slane %v328, 7
    %v457 = vsel %vm359, %v455, %v456
    %v458 = vrot.slane %v329, 7
    %v459 = vsel %vm359, %v456, %v458
    %v460 = vrot.slane %v330, 7
    %v461 = vsel %vm359, %v458, %v460
    %v462 = vrot.slane %v331, 7
    %v463 = vsel %vm359, %v460, %v462
    %v464 = vrot.slane %v332, 7
    %v465 = vsel %vm359, %v462, %v464
    %v466 = vrot.slane %v333, 7
    %v467 = vsel %vm359, %v464, %v466
    %v468 = vrot.slane %v334, 7
    %v469 = vsel %vm359, %v466, %v468
    %v470 = vrot.slane %v335, 7
    %v471 = vsel %vm359, %v468, %v470
    %v472 = vrot.slane %v336, 7
    %v473 = vsel %vm359, %v470, %v472
    %v474 = vrot.slane %v337, 7
    %v475 = vsel %vm359, %v472, %v474
    %v476 = vrot.slane %v338, 7
    %v477 = vsel %vm359, %v474, %v476
    %v478 = vrot.slane %v339, 7
    %v479 = vsel %vm359, %v476, %v478
    %v480 = vrot.slane %v340, 7
    %v481 = vsel %vm359, %v478, %v480
    %v482 = vrot.slane %v341, 7
    %v483 = vsel %vm359, %v480, %v482
    %v484 = vrot.slane %v342, 7
    %v485 = vsel %vm359, %v482, %v484
    %v502 = vmul.f32 %v423, %v455
    %v503 = vmul.f32 %v424, %v457
    %v504 = vmul.f32 %v425, %v459
    %v505 = vmul.f32 %v426, %v461
    %v506 = vmul.f32 %v427, %v463
    %v507 = vmul.f32 %v428, %v465
    %v508 = vmul.f32 %v429, %v467
    %v509 = vmul.f32 %v430, %v469
    %v510 = vmul.f32 %v431, %v471
    %v511 = vmul.f32 %v432, %v473
    %v512 = vmul.f32 %v433, %v475
    %v513 = vmul.f32 %v434, %v477
    %v514 = vmul.f32 %v435, %v479
    %v515 = vmul.f32 %v436, %v481
    %v516 = vmul.f32 %v437, %v483
    %v517 = vmul.f32 %v438, %v485
    %518 = vrot.lane.b32.xlu0 %v311, 1
    %v519 = vpop.permute.xlu0 %518
    %520 = vrot.lane.b32.xlu0 %v312, 1
    %v521 = vpop.permute.xlu0 %520
    %522 = vrot.lane.b32.xlu0 %v313, 1
    %v523 = vpop.permute.xlu0 %522
    %524 = vrot.lane.b32.xlu0 %v314, 1
    %v525 = vpop.permute.xlu0 %524
    %526 = vrot.lane.b32.xlu0 %v315, 1
    %v527 = vpop.permute.xlu0 %526
    %528 = vrot.lane.b32.xlu0 %v316, 1
    %v529 = vpop.permute.xlu0 %528
    %530 = vrot.lane.b32.xlu0 %v317, 1
    %v531 = vpop.permute.xlu0 %530
    %532 = vrot.lane.b32.xlu0 %v318, 1
    %v533 = vpop.permute.xlu0 %532
    %534 = vrot.lane.b32.xlu0 %v319, 1
    %v535 = vpop.permute.xlu0 %534
    %536 = vrot.lane.b32.xlu0 %v320, 1
    %v537 = vpop.permute.xlu0 %536
    %538 = vrot.lane.b32.xlu0 %v321, 1
    %v539 = vpop.permute.xlu0 %538
    %540 = vrot.lane.b32.xlu0 %v322, 1
    %v541 = vpop.permute.xlu0 %540
    %542 = vrot.lane.b32.xlu0 %v323, 1
    %v543 = vpop.permute.xlu0 %542
    %544 = vrot.lane.b32.xlu0 %v324, 1
    %v545 = vpop.permute.xlu0 %544
    %546 = vrot.lane.b32.xlu0 %v325, 1
    %v547 = vpop.permute.xlu0 %546
    %548 = vrot.lane.b32.xlu0 %v326, 1
    %v549 = vpop.permute.xlu0 %548
    %v566 = vsub.f32 %v311, %v519
    %v567 = vsub.f32 %v312, %v521
    %v568 = vsub.f32 %v313, %v523
    %v569 = vsub.f32 %v314, %v525
    %v570 = vsub.f32 %v315, %v527
    %v571 = vsub.f32 %v316, %v529
    %v572 = vsub.f32 %v317, %v531
    %v573 = vsub.f32 %v318, %v533
    %v574 = vsub.f32 %v319, %v535
    %v575 = vsub.f32 %v320, %v537
    %v576 = vsub.f32 %v321, %v539
    %v577 = vsub.f32 %v322, %v541
    %v578 = vsub.f32 %v323, %v543
    %v579 = vsub.f32 %v324, %v545
    %v580 = vsub.f32 %v325, %v547
    %v581 = vsub.f32 %v326, %v549
    %v582 = vand.u32 2147483647, %v566
    %v583 = vand.u32 2147483647, %v567
    %v584 = vand.u32 2147483647, %v568
    %v585 = vand.u32 2147483647, %v569
    %v586 = vand.u32 2147483647, %v570
    %v587 = vand.u32 2147483647, %v571
    %v588 = vand.u32 2147483647, %v572
    %v589 = vand.u32 2147483647, %v573
    %v590 = vand.u32 2147483647, %v574
    %v591 = vand.u32 2147483647, %v575
    %v592 = vand.u32 2147483647, %v576
    %v593 = vand.u32 2147483647, %v577
    %v594 = vand.u32 2147483647, %v578
    %v595 = vand.u32 2147483647, %v579
    %v596 = vand.u32 2147483647, %v580
    %v597 = vand.u32 2147483647, %v581
    %v598 = vld [vmem:[#allocation3] sm:$0x1]
    %vm615 = vcmask 1046528
    %v616 = vrot.slane %v502, 1
    %v617 = vrot.slane %v503, 1
    %v618 = vsel %vm615, %v616, %v617
    %v619 = vrot.slane %v504, 1
    %v620 = vsel %vm615, %v617, %v619
    %v621 = vrot.slane %v505, 1
    %v622 = vsel %vm615, %v619, %v621
    %v623 = vrot.slane %v506, 1
    %v624 = vsel %vm615, %v621, %v623
    %v625 = vrot.slane %v507, 1
    %v626 = vsel %vm615, %v623, %v625
    %v627 = vrot.slane %v508, 1
    %v628 = vsel %vm615, %v625, %v627
    %v629 = vrot.slane %v509, 1
    %v630 = vsel %vm615, %v627, %v629
    %v631 = vrot.slane %v510, 1
    %v632 = vsel %vm615, %v629, %v631
    %v633 = vrot.slane %v511, 1
    %v634 = vsel %vm615, %v631, %v633
    %v635 = vrot.slane %v512, 1
    %v636 = vsel %vm615, %v633, %v635
    %v637 = vrot.slane %v513, 1
    %v638 = vsel %vm615, %v635, %v637
    %v639 = vrot.slane %v514, 1
    %v640 = vsel %vm615, %v637, %v639
    %v641 = vrot.slane %v515, 1
    %v642 = vsel %vm615, %v639, %v641
    %v643 = vrot.slane %v516, 1
    %v644 = vsel %vm615, %v641, %v643
    %v645 = vrot.slane %v517, 1
    %v646 = vsel %vm615, %v643, %v645
    %vm663 = vcmask 130048
    %v664 = vsel %vm663, %v618, 0.0
    %v665 = vsel %vm663, %v620, 0.0
    %v666 = vadd.f32 %v664, %v665
    %v667 = vsel %vm663, %v622, 0.0
    %v668 = vadd.f32 %v666, %v667
    %v669 = vsel %vm663, %v624, 0.0
    %v670 = vadd.f32 %v668, %v669
    %v671 = vsel %vm663, %v626, 0.0
    %v672 = vadd.f32 %v670, %v671
    %v673 = vsel %vm663, %v628, 0.0
    %v674 = vadd.f32 %v672, %v673
    %v675 = vsel %vm663, %v630, 0.0
    %v676 = vadd.f32 %v674, %v675
    %v677 = vsel %vm663, %v632, 0.0
    %v678 = vadd.f32 %v676, %v677
    %v679 = vsel %vm663, %v634, 0.0
    %v680 = vadd.f32 %v678, %v679
    %v681 = vsel %vm663, %v636, 0.0
    %v682 = vadd.f32 %v680, %v681
    %v683 = vsel %vm663, %v638, 0.0
    %v684 = vadd.f32 %v682, %v683
    %v685 = vsel %vm663, %v640, 0.0
    %v686 = vadd.f32 %v684, %v685
    %v687 = vsel %vm663, %v642, 0.0
    %v688 = vadd.f32 %v686, %v687
    %v689 = vsel %vm663, %v644, 0.0
    %v690 = vadd.f32 %v688, %v689
    %v691 = vsel %vm663, %v646, 0.0
    %v692 = vadd.f32 %v690, %v691
    %vm693 = vcmask 129024
    %v694 = vsel %vm693, %v645, 0.0
    %v695 = vadd.f32 %v692, %v694
    %v696 = vrot.slane %v695, 4
    %v697 = vadd.f32 %v695, %v696
    %v698 = vrot.slane %v697, 2
    %v699 = vadd.f32 %v697, %v698
    %v700 = vrot.slane %v699, 1
    %v701 = vadd.f32 %v699, %v700
    %v702 = vadd.f32 %v598, %v701
    %vm703 = vcmask 122880
    %704 = vst.msk [vmem:[#allocation3] sm:$0x1] %vm703, %v702
    %v705 = vld [vmem:[#allocation3 + $0x1] sm:$0x1]
    %vm706 = vcmask 130056
    %v707 = vsel %vm706, %v582, 0.0
    %v708 = vsel %vm706, %v583, 0.0
    %v709 = vadd.f32 %v707, %v708
    %v710 = vsel %vm706, %v584, 0.0
    %v711 = vadd.f32 %v709, %v710
    %v712 = vsel %vm706, %v585, 0.0
    %v713 = vadd.f32 %v711, %v712
    %v714 = vsel %vm706, %v586, 0.0
    %v715 = vadd.f32 %v713, %v714
    %v716 = vsel %vm706, %v587, 0.0
    %v717 = vadd.f32 %v715, %v716
    %v718 = vsel %vm706, %v588, 0.0
    %v719 = vadd.f32 %v717, %v718
    %v720 = vsel %vm706, %v589, 0.0
    %v721 = vadd.f32 %v719, %v720
    %v722 = vsel %vm706, %v590, 0.0
    %v723 = vadd.f32 %v721, %v722
    %v724 = vsel %vm706, %v591, 0.0
    %v725 = vadd.f32 %v723, %v724
    %v726 = vsel %vm706, %v592, 0.0
    %v727 = vadd.f32 %v725, %v726
    %v728 = vsel %vm706, %v593, 0.0
    %v729 = vadd.f32 %v727, %v728
    %v730 = vsel %vm706, %v594, 0.0
    %v731 = vadd.f32 %v729, %v730
    %v732 = vsel %vm706, %v595, 0.0
    %v733 = vadd.f32 %v731, %v732
    %v734 = vsel %vm706, %v596, 0.0
    %v735 = vadd.f32 %v733, %v734
    %v736 = vsel %vm706, %v597, 0.0
    %v737 = vadd.f32 %v735, %v736
    %v738 = vrot.slane %v737, 4
    %v739 = vadd.f32 %v737, %v738
    %v740 = vrot.slane %v739, 2
    %v741 = vadd.f32 %v739, %v740
    %v742 = vrot.slane %v741, 1
    %v743 = vadd.f32 %v741, %v742
    %745 = vrot.lane.b32.xlu0 %v743, 127
    %v746 = vpop.permute.xlu0 %745
    %v748 = vadd.f32 %v705, %v746
    %vm749 = vcmask 114688
    %750 = vst.msk [vmem:[#allocation3 + $0x1] sm:$0x1] %vm749, %v748
    // Predicated region
    $region10: #{tpu_custom_call.1} parent=1 // pred_check
      _
    $region11: #{tpu_custom_call.1} parent=1 // pred_check_branch
      %752 = sbr.rel (0) target = $region13
    $region12: #{tpu_custom_call.1} parent=1 // pred_region
      %754 = vsyncadd [#allocation4], 0
      %s756 = sshll.u32 [#allocation3], 4
      %s757 = int_to_ptr.vmem [resolvable:$true] %s756
      %s758 = sshll.u32 %s1, 4
      %s759 = int_to_ptr.hbm [resolvable:$true] %s758
      %761 = dma.vmem_to_hbm [thread:$0]  %s757, 32, %s759, [#allocation4]
    $region13: #{tpu_custom_call.1} parent=1 // pred_fallthru
      _
    // Predicated region
    $region14: #{tpu_custom_call.1} parent=1 // pred_check
      _
    $region15: #{tpu_custom_call.1} parent=1 // pred_check_branch
      %763 = sbr.rel (0) target = $region17
    $region16: #{tpu_custom_call.1} parent=1 // pred_region
      %765 = dma.done [#allocation4], 32
    $region17: #{tpu_custom_call.1} parent=1 // pred_fallthru
      _
    %766 = vsyncpa [#allocation4], 1

</llo_original>
